<compile_context>
chip_gen: v7x
topology: tpu7x:2x2x1
jax: 0.10.0
libtpu: 0.0.40
codegen_flags: <defaults>
</compile_context>

<pallas_src>
import math

import jax
import jax.numpy as jnp
from jax.experimental import pallas as pl
from jax.experimental.pallas import tpu as pltpu


def _ffn_kernel(x_ref, w1_ref, b1_ref, w2_ref, b2_ref, o_ref, acc_ref):
    # Grid = (row_tiles, ff_tiles); ff (axis 1, innermost) is the reduction.
    # x_ref:  (TM, d_model)  input dtype   (same block for every k -> no re-DMA)
    # w1_ref: (d_model, TFF) bf16          (= fc1.weight.T chunk)
    # b1_ref: (1, TFF)       f32
    # w2_ref: (TFF, d_model) bf16          (= fc2.weight.T chunk)
    # b2_ref: (1, d_model)   f32           (constant block)
    # o_ref:  (TM, d_model)  input dtype   (revisited across k; written once)
    # acc_ref:(TM, d_model)  f32 scratch accumulator
    k = pl.program_id(1)

    @pl.when(k == 0)
    def _init():
        acc_ref[...] = jnp.zeros_like(acc_ref)

    x = x_ref[...].astype(jnp.bfloat16)

    # fc1 chunk + bias + ReLU: bf16 MXU matmul, f32 accumulation, f32 epilogue.
    h = jnp.dot(x, w1_ref[...], preferred_element_type=jnp.float32)
    h = jnp.maximum(h + b1_ref[...], 0.0)

    # fc2 chunk: accumulate the partial (TM, d_model) contribution in f32.
    acc_ref[...] += jnp.dot(h.astype(jnp.bfloat16), w2_ref[...],
                            preferred_element_type=jnp.float32)

    @pl.when(k == pl.num_programs(1) - 1)
    def _finish():
        o_ref[...] = (acc_ref[...] + b2_ref[...]).astype(o_ref.dtype)


def _pick_ff_tile(d_ff, cap):
    """Largest tile <= cap that divides d_ff (multiple-of-128 preferred)."""
    if d_ff <= cap:
        return d_ff
    start = cap - (cap % 128) if cap >= 128 else cap
    for cand in range(start, 0, -128):
        if d_ff % cand == 0:
            return cand
    return d_ff  # no clean divisor: keep d_ff un-tiled (single reduction step)


def position_wise_feed_forward(x, params, *, block_rows=256, block_ff=1024):
    """x: (..., d_model); params = (w1, b1, w2, b2) in PyTorch Linear layout:
       w1: (d_ff, d_model), b1: (d_ff,), w2: (d_model, d_ff), b2: (d_model,)."""
    w1, b1, w2, b2 = params
    orig_shape = x.shape
    d_model = orig_shape[-1]
    d_ff = w1.shape[0]
    rows = math.prod(orig_shape[:-1])
    x2 = x.reshape(rows, d_model)

    # Pre-transpose + pre-cast weights ONCE, outside the kernel / grid loop.
    w1t = jnp.asarray(w1).T.astype(jnp.bfloat16)           # (d_model, d_ff)
    w2t = jnp.asarray(w2).T.astype(jnp.bfloat16)           # (d_ff, d_model)
    b1r = jnp.asarray(b1).reshape(1, d_ff).astype(jnp.float32)
    b2r = jnp.asarray(b2).reshape(1, d_model).astype(jnp.float32)

    # Row tile: fixed large tile + cdiv grid; Pallas masks the ragged last
    # block (each output row depends only on its own input row, so this is
    # safe).  No more silent degrade to a single giant block.
    tm = min(block_rows, rows)
    # d_ff tile must divide d_ff exactly (ragged reduction chunks would add
    # out-of-bounds garbage into the accumulator).
    tff = _pick_ff_tile(d_ff, block_ff)

    grid = (pl.cdiv(rows, tm), d_ff // tff)

    x_spec = pl.BlockSpec((tm, d_model), lambda i, k: (i, 0))
    w1_spec = pl.BlockSpec((d_model, tff), lambda i, k: (0, k))
    b1_spec = pl.BlockSpec((1, tff), lambda i, k: (0, k))
    w2_spec = pl.BlockSpec((tff, d_model), lambda i, k: (k, 0))
    b2_spec = pl.BlockSpec((1, d_model), lambda i, k: (0, 0))
    o_spec = pl.BlockSpec((tm, d_model), lambda i, k: (i, 0))

    # Advisory cost for XLA's scheduler: 2 matmuls (2 flops / MAC each).
    flops = 4 * rows * d_model * d_ff
    bytes_accessed = (x2.size * x2.dtype.itemsize            # x read
                      + rows * d_model * x2.dtype.itemsize   # y write
                      + w1t.size * 2 + w2t.size * 2          # bf16 weights
                      + b1r.size * 4 + b2r.size * 4)         # f32 biases
    cost = pl.CostEstimate(flops=flops, transcendentals=0,
                           bytes_accessed=int(bytes_accessed))

    out2 = pl.pallas_call(
        _ffn_kernel,
        out_shape=jax.ShapeDtypeStruct((rows, d_model), x.dtype),
        grid_spec=pltpu.PrefetchScalarGridSpec(
            num_scalar_prefetch=0,
            grid=grid,
            in_specs=[x_spec, w1_spec, b1_spec, w2_spec, b2_spec],
            out_specs=o_spec,
            scratch_shapes=[pltpu.VMEM((tm, d_model), jnp.float32)],
        ),
        compiler_params=pltpu.CompilerParams(
            # Row axis independent (megacore-shardable on v7x); d_ff axis is
            # the reduction feeding the accumulator.
            dimension_semantics=("parallel", "arbitrary"),
            # Above the 16/32 MiB scoped defaults so the 256-row / 1024-ff
            # tiles compile; <= physical VMEM on every chip (incl. v7x 64 MiB).
            vmem_limit_bytes=56 * 1024 * 1024,
        ),
        cost_estimate=cost,
    )(x2, w1t, b1r, w2t, b2r)

    return out2.reshape(orig_shape)


def _reference(x, params):
    """Plain-JAX f32 reference matching the PyTorch module semantics."""
    w1, b1, w2, b2 = params
    h = jnp.maximum(x @ w1.T + b1, 0.0)
    return h @ w2.T + b2


if __name__ == "__main__":
    # Small shapes, but chosen so the grid has >1 row step and the last row
    # block is ragged (rows = 320, TM = 256), exercising the cdiv/masking path.
    B, S, d_model, d_ff = 2, 160, 128, 256

    key = jax.random.PRNGKey(0)
    k1, k2, k3, k4, k5 = jax.random.split(key, 5)

    # nn.Linear default init: uniform(-1/sqrt(fan_in), 1/sqrt(fan_in))
    bound1 = 1.0 / math.sqrt(d_model)
    w1 = jax.random.uniform(k1, (d_ff, d_model), jnp.float32, -bound1, bound1)
    b1 = jax.random.uniform(k2, (d_ff,), jnp.float32, -bound1, bound1)
    bound2 = 1.0 / math.sqrt(d_ff)
    w2 = jax.random.uniform(k3, (d_model, d_ff), jnp.float32, -bound2, bound2)
    b2 = jax.random.uniform(k4, (d_model,), jnp.float32, -bound2, bound2)

    x = jax.random.normal(k5, (B, S, d_model), jnp.float32)
    params = (w1, b1, w2, b2)

    out = position_wise_feed_forward(x, params, block_rows=256, block_ff=1024)
    out = jax.block_until_ready(out)

    ref = _reference(x, params)
    assert out.shape == x.shape
    max_diff = jnp.max(jnp.abs(out - ref))
    # bf16 matmul operands with f32 accumulation -> small rounding vs f32 ref.
    # TODO(synk): at production d_model/d_ff, re-validate the bf16 tolerance.
    assert jnp.allclose(out, ref, atol=2e-2, rtol=2e-2), (
        f"max abs diff {max_diff}")

    print("KERNEL_OK")
</pallas_src>

<mosaic_0001>
module attributes {stable_mosaic.version = 11 : i64} {
  func.func @_ffn_kernel(%arg0: i32, %arg1: i32, %arg2: memref<256x128xf32, #tpu.memory_space<vmem>>, %arg3: memref<128x256xbf16, #tpu.memory_space<vmem>>, %arg4: memref<1x256xf32, #tpu.memory_space<vmem>>, %arg5: memref<256x128xbf16, #tpu.memory_space<vmem>>, %arg6: memref<1x128xf32, #tpu.memory_space<vmem>>, %arg7: memref<256x128xf32, #tpu.memory_space<vmem>>, %arg8: memref<256x128xf32, #tpu.memory_space<vmem>>) attributes {dimension_semantics = [#tpu.dimension_semantics<parallel>, #tpu.dimension_semantics<arbitrary>], iteration_bounds = array<i64: 2, 1>, scalar_prefetch = 0 : i64, scratch_operands = 1 : i64, tpu.core_type = #tpu.core_type<tc>, window_params = [{transform_indices = @transform_0, window_bounds = array<i64: 256, 128>}, {transform_indices = @transform_1, window_bounds = array<i64: 128, 256>}, {transform_indices = @transform_2, window_bounds = array<i64: 1, 256>}, {transform_indices = @transform_3, window_bounds = array<i64: 256, 128>}, {pipeline_mode = #tpu.pipeline_mode<synchronous>, transform_indices = @transform_4, window_bounds = array<i64: 1, 128>}, {transform_indices = @transform_5, window_bounds = array<i64: 256, 128>}]} {
    %c0_i32 = arith.constant 0 : i32
    %0 = arith.cmpi eq, %arg1, %c0_i32 : i32
    %1 = arith.extui %0 : i1 to i32
    %c0_i32_0 = arith.constant 0 : i32
    %2 = arith.cmpi ne, %1, %c0_i32_0 : i32
    scf.if %2 {
      %cst_16 = arith.constant 0.000000e+00 : f32
      %21 = vector.broadcast %cst_16 : f32 to vector<256x128xf32>
      %c0_17 = arith.constant 0 : index
      %c0_18 = arith.constant 0 : index
      %22 = vector.load %arg8[%c0_17, %c0_18] : memref<256x128xf32, #tpu.memory_space<vmem>>, vector<256x128xf32>
      tpu.vector_store %arg8[%c0_17, %c0_18], %21 {strides = array<i32>} : memref<256x128xf32, #tpu.memory_space<vmem>>, vector<256x128xf32>,
    } else {
    }
    %c0 = arith.constant 0 : index
    %c0_1 = arith.constant 0 : index
    %3 = vector.load %arg2[%c0, %c0_1] : memref<256x128xf32, #tpu.memory_space<vmem>>, vector<256x128xf32>
    %4 = arith.truncf %3 : vector<256x128xf32> to vector<256x128xbf16>
    %c0_2 = arith.constant 0 : index
    %c0_3 = arith.constant 0 : index
    %5 = vector.load %arg3[%c0_2, %c0_3] : memref<128x256xbf16, #tpu.memory_space<vmem>>, vector<128x256xbf16>
    %cst = arith.constant dense<0.000000e+00> : vector<256x256xf32>
    %6 = tpu.matmul %4, %5, %cst {dimension_numbers = #tpu.dot_dimension_numbers<[1], [0], [0], [1], [0, 0, 1, 1], [], []>} : vector<256x128xbf16>, vector<128x256xbf16>, vector<256x256xf32> -> vector<256x256xf32>
    %c0_4 = arith.constant 0 : index
    %c0_5 = arith.constant 0 : index
    %7 = vector.load %arg4[%c0_4, %c0_5] : memref<1x256xf32, #tpu.memory_space<vmem>>, vector<1x256xf32>
    %8 = vector.broadcast %7 : vector<1x256xf32> to vector<256x256xf32>
    %9 = arith.addf %6, %8 : vector<256x256xf32>
    %cst_6 = arith.constant 0.000000e+00 : f32
    %10 = vector.broadcast %cst_6 : f32 to vector<256x256xf32>
    %11 = arith.maximumf %9, %10 : vector<256x256xf32>
    %c0_7 = arith.constant 0 : index
    %c0_8 = arith.constant 0 : index
    %12 = vector.load %arg8[%c0_7, %c0_8] : memref<256x128xf32, #tpu.memory_space<vmem>>, vector<256x128xf32>
    %13 = arith.truncf %11 : vector<256x256xf32> to vector<256x256xbf16>
    %c0_9 = arith.constant 0 : index
    %c0_10 = arith.constant 0 : index
    %14 = vector.load %arg5[%c0_9, %c0_10] : memref<256x128xbf16, #tpu.memory_space<vmem>>, vector<256x128xbf16>
    %cst_11 = arith.constant dense<0.000000e+00> : vector<256x128xf32>
    %15 = tpu.matmul %13, %14, %cst_11 {dimension_numbers = #tpu.dot_dimension_numbers<[1], [0], [0], [1], [0, 0, 1, 1], [], []>} : vector<256x256xbf16>, vector<256x128xbf16>, vector<256x128xf32> -> vector<256x128xf32>
    %16 = arith.addf %12, %15 : vector<256x128xf32>
    %c0_12 = arith.constant 0 : index
    %c0_13 = arith.constant 0 : index
    %17 = vector.load %arg8[%c0_12, %c0_13] : memref<256x128xf32, #tpu.memory_space<vmem>>, vector<256x128xf32>
    tpu.vector_store %arg8[%c0_12, %c0_13], %16 {strides = array<i32>} : memref<256x128xf32, #tpu.memory_space<vmem>>, vector<256x128xf32>,
    %c0_i32_14 = arith.constant 0 : i32
    %18 = arith.cmpi eq, %arg1, %c0_i32_14 : i32
    %19 = arith.extui %18 : i1 to i32
    %c0_i32_15 = arith.constant 0 : i32
    %20 = arith.cmpi ne, %19, %c0_i32_15 : i32
    scf.if %20 {
      %c0_16 = arith.constant 0 : index
      %c0_17 = arith.constant 0 : index
      %21 = vector.load %arg8[%c0_16, %c0_17] : memref<256x128xf32, #tpu.memory_space<vmem>>, vector<256x128xf32>
      %c0_18 = arith.constant 0 : index
      %c0_19 = arith.constant 0 : index
      %22 = vector.load %arg6[%c0_18, %c0_19] : memref<1x128xf32, #tpu.memory_space<vmem>>, vector<1x128xf32>
      %23 = vector.broadcast %22 : vector<1x128xf32> to vector<256x128xf32>
      %24 = arith.addf %21, %23 : vector<256x128xf32>
      %c0_20 = arith.constant 0 : index
      %c0_21 = arith.constant 0 : index
      %25 = vector.load %arg7[%c0_20, %c0_21] : memref<256x128xf32, #tpu.memory_space<vmem>>, vector<256x128xf32>
      tpu.vector_store %arg7[%c0_20, %c0_21], %24 {strides = array<i32>} : memref<256x128xf32, #tpu.memory_space<vmem>>, vector<256x128xf32>,
    } else {
    }
    return
  }
  func.func @transform_0(%arg0: i32, %arg1: i32) -> (i32, i32) {
    %c0_i32 = arith.constant 0 : i32
    %c0_i32_0 = arith.constant 0 : i32
    return %arg0, %c0_i32 : i32, i32
  }
  func.func @transform_1(%arg0: i32, %arg1: i32) -> (i32, i32) {
    %c0_i32 = arith.constant 0 : i32
    %c0_i32_0 = arith.constant 0 : i32
    return %c0_i32, %arg1 : i32, i32
  }
  func.func @transform_2(%arg0: i32, %arg1: i32) -> (i32, i32) {
    %c0_i32 = arith.constant 0 : i32
    %c0_i32_0 = arith.constant 0 : i32
    return %c0_i32, %arg1 : i32, i32
  }
  func.func @transform_3(%arg0: i32, %arg1: i32) -> (i32, i32) {
    %c0_i32 = arith.constant 0 : i32
    %c0_i32_0 = arith.constant 0 : i32
    return %arg1, %c0_i32 : i32, i32
  }
  func.func @transform_4(%arg0: i32, %arg1: i32) -> (i32, i32) {
    %c0_i32 = arith.constant 0 : i32
    %c0_i32_0 = arith.constant 0 : i32
    %c0_i32_1 = arith.constant 0 : i32
    return %c0_i32, %c0_i32_0 : i32, i32
  }
  func.func @transform_5(%arg0: i32, %arg1: i32) -> (i32, i32) {
    %c0_i32 = arith.constant 0 : i32
    %c0_i32_0 = arith.constant 0 : i32
    return %arg0, %c0_i32 : i32, i32
  }
}

</mosaic_0001>

<llo_original>
// kernel: tpu_custom_call.1
$region0: #{tpu_custom_call.1}
  #allocation0 [shape = 'u32[]', space=smem, size = 0x4, offset = 0x4, fixed_abs, tag = 'smem constant byte address 0x4 - core index']
  #allocation1 [shape = 'u32[144,128]{1,0:T(1,128)}', space=vmem, size = 0x12000, scoped, tag = 'internal scratch']
  #allocation2 [shape = 'f32[256,128]{1,0:T(8,128)}', space=vmem, size = 0x20000, scoped, tag = 'scratch operand']
  %s0 = inlined_call_operand.hbm [shape: f32[320,128], index: 0, kind: input, shape index: {}]
  %s1 = inlined_call_operand.hbm [shape: bf16[128,256], index: 1, kind: input, shape index: {}]
  %s2 = inlined_call_operand.vmem [shape: f32[1,256], index: 2, kind: input, shape index: {}]
  %s3 = inlined_call_operand.hbm [shape: bf16[256,128], index: 3, kind: input, shape index: {}]
  %s4 = inlined_call_operand.vmem [shape: f32[1,128], index: 4, kind: input, shape index: {}]
  %s5 = inlined_call_operand.hbm [shape: f32[320,128], index: 5, kind: output, shape index: {}]
  %s6 = sld [smem:[#allocation0]]
  $region73: #{tpu_custom_call.1} parent=0
    _
  %s8 = ssub.s32 1, %s6
  %s9 = scalar_select 0, %s8, %s6
  $region1: #{tpu_custom_call.1} parent=0
    #allocation3 [shape = 'u8[262144]{0}', space=vmem, size = 0x40000, scoped, tag = 'input window, operand 0']
    #allocation4 [shape = 's32[2]{0}', space=sflag, size = 0x8, scoped, tag = 'scoped memory for tpu_custom_call.1']
    #allocation5 [shape = 's32[2]{0}', space=sflag, size = 0x8, scoped, tag = 'scoped memory for tpu_custom_call.1']
    #allocation6 [shape = 'u8[65536]{0}', space=vmem, size = 0x10000, scoped, tag = 'input window, operand 1, single buffered']
    #allocation7 [shape = 's32[1]{0}', space=sflag, size = 0x4, scoped, tag = 'scoped memory for tpu_custom_call.1']
    #allocation8 [shape = 'u8[65536]{0}', space=vmem, size = 0x10000, scoped, tag = 'input window, operand 3, single buffered']
    #allocation9 [shape = 'u8[262144]{0}', space=vmem, size = 0x40000, scoped, tag = 'output window, operand 0']
    %10 = vsyncpa [#allocation4], 0
    %s11 = scalar_lea.sflag [#allocation4], 1
    %12 = vsyncpa %s11, 0
    %13 = vsyncpa [#allocation7], 0
    %14 = vsyncpa [#allocation5], 0
    %s15 = scalar_lea.sflag [#allocation5], 1
    %16 = vsyncpa %s15, 0
    loop: start=0, step=1, limit=4
    $region2: #{tpu_custom_call.1} parent=1 // loop_pre_header
      _
    $region3: #{tpu_custom_call.1} parent=1 // loop_header
      %s18 = sphi 0, %s22
      %p19 = scmp.ge.s32.totalorder %s18, 4
      %s25 = sphi 0, %s37
      %s26 = sphi 0, %s33
      %s27 = sphi 0, %s25
      %s28 = sphi 0, %s26
      %s29 = sphi 0, %s27
      %s30 = sphi 0, %s28
      %s40 = sphi 0, %s42
      %s43 = sphi 0, %s40
      %s44 = sphi 0, %s43
      %s60 = sphi 0, %s44
      %s66 = sphi 0, %s68
      %s69 = sphi 0, %s66
      %s70 = sphi 0, %s69
      %s86 = sphi 0, %s70
      %s92 = sphi 0, %s94
      %s95 = sphi 0, %s92
      %s96 = sphi 0, %s95
      %s112 = sphi 0, %s96
      %s118 = sphi 0, %s120
      %s121 = sphi 0, %s118
      %s122 = sphi 0, %s121
      %s138 = sphi 0, %s122
      %s142 = sphi 0, %s142
      %s144 = sphi 0, %s142
      %s145 = sphi 0, %s144
      %s159 = sphi 0, %s145
      %s165 = sphi 0, %s167
      %s168 = sphi 0, %s165
      %s169 = sphi 0, %s168
      %s185 = sphi 0, %s169
    $region4: #{tpu_custom_call.1} parent=1 // loop_header_branch
      %21 = sbr.rel (%p19) target = $region8
    $region5: #{tpu_custom_call.1} parent=1 // loop_body
      %s23 = ssub.s32 %s18, 1
      %s24 = ssub.s32 %s18, 2
      %s31 = sadd.s32 1, %s26
      %p32 = scmp.ge.s32.totalorder %s31, 1
      %s33 = scalar_select %p32, 0, %s31
      %s34 = sadd.s32 1, %s25
      %s35 = scalar_select %p32, %s34, %s25
      %p36 = scmp.ge.s32.totalorder %s35, 2
      %s37 = scalar_select %p36, 0, %s35
      %s38 = ssub.s32 %s25, %s37
      %p39 = scmp.eq.s32.totalorder %s38, 0
      %s41 = sadd.s32 %s40, 1
      %s42 = scalar_select %p39, %s40, %s41
      %p45 = pneg %p39
      %p46 = scmp.eq.s32.totalorder %s18, 1
      %p47 = por %p45, %p46
      %p48 = scmp.ne.s32.totalorder %s40, %s43
      %p49 = scmp.eq.s32.totalorder %s18, 0
      %p50 = por %p48, %p49
      %p51 = scmp.ne.s32.totalorder %s40, %s43
      %p52 = scmp.eq.s32.totalorder %s23, 1
      %p53 = por %p51, %p52
      %p54 = scmp.ne.s32.totalorder %s43, %s44
      %p55 = scmp.eq.s32.totalorder %s23, 0
      %p56 = por %p54, %p55
      %p57 = scmp.ne.s32.totalorder %s43, %s44
      %p58 = scmp.eq.s32.totalorder %s24, 1
      %p59 = por %p57, %p58
      %p61 = scmp.ne.s32.totalorder %s44, %s60
      %p62 = scmp.eq.s32.totalorder %s24, 0
      %p63 = por %p61, %p62
      %s64 = ssub.s32 %s26, %s33
      %p65 = scmp.eq.s32.totalorder %s64, 0
      %s67 = sadd.s32 %s66, 1
      %s68 = scalar_select %p65, %s66, %s67
      %p71 = pneg %p65
      %p72 = scmp.eq.s32.totalorder %s18, 1
      %p73 = por %p71, %p72
      %p74 = scmp.ne.s32.totalorder %s66, %s69
      %p75 = scmp.eq.s32.totalorder %s18, 0
      %p76 = por %p74, %p75
      %p77 = scmp.ne.s32.totalorder %s66, %s69
      %p78 = scmp.eq.s32.totalorder %s23, 1
      %p79 = por %p77, %p78
      %p80 = scmp.ne.s32.totalorder %s69, %s70
      %p81 = scmp.eq.s32.totalorder %s23, 0
      %p82 = por %p80, %p81
      %p83 = scmp.ne.s32.totalorder %s69, %s70
      %p84 = scmp.eq.s32.totalorder %s24, 1
      %p85 = por %p83, %p84
      %p87 = scmp.ne.s32.totalorder %s70, %s86
      %p88 = scmp.eq.s32.totalorder %s24, 0
      %p89 = por %p87, %p88
      %s90 = ssub.s32 %s26, %s33
      %p91 = scmp.eq.s32.totalorder %s90, 0
      %s93 = sadd.s32 %s92, 1
      %s94 = scalar_select %p91, %s92, %s93
      %p97 = pneg %p91
      %p98 = scmp.eq.s32.totalorder %s18, 1
      %p99 = por %p97, %p98
      %p100 = scmp.ne.s32.totalorder %s92, %s95
      %p101 = scmp.eq.s32.totalorder %s18, 0
      %p102 = por %p100, %p101
      %p103 = scmp.ne.s32.totalorder %s92, %s95
      %p104 = scmp.eq.s32.totalorder %s23, 1
      %p105 = por %p103, %p104
      %p106 = scmp.ne.s32.totalorder %s95, %s96
      %p107 = scmp.eq.s32.totalorder %s23, 0
      %p108 = por %p106, %p107
      %p109 = scmp.ne.s32.totalorder %s95, %s96
      %p110 = scmp.eq.s32.totalorder %s24, 1
      %p111 = por %p109, %p110
      %p113 = scmp.ne.s32.totalorder %s96, %s112
      %p114 = scmp.eq.s32.totalorder %s24, 0
      %p115 = por %p113, %p114
      %s116 = ssub.s32 %s26, %s33
      %p117 = scmp.eq.s32.totalorder %s116, 0
      %s119 = sadd.s32 %s118, 1
      %s120 = scalar_select %p117, %s118, %s119
      %p123 = pneg %p117
      %p124 = scmp.eq.s32.totalorder %s18, 1
      %p125 = por %p123, %p124
      %p126 = scmp.ne.s32.totalorder %s118, %s121
      %p127 = scmp.eq.s32.totalorder %s18, 0
      %p128 = por %p126, %p127
      %p129 = scmp.ne.s32.totalorder %s118, %s121
      %p130 = scmp.eq.s32.totalorder %s23, 1
      %p131 = por %p129, %p130
      %p132 = scmp.ne.s32.totalorder %s121, %s122
      %p133 = scmp.eq.s32.totalorder %s23, 0
      %p134 = por %p132, %p133
      %p135 = scmp.ne.s32.totalorder %s121, %s122
      %p136 = scmp.eq.s32.totalorder %s24, 1
      %p137 = por %p135, %p136
      %p139 = scmp.ne.s32.totalorder %s122, %s138
      %p140 = scmp.eq.s32.totalorder %s24, 0
      %p141 = por %p139, %p140
      %s143 = sadd.s32 %s142, 1
      %p146 = scmp.eq.s32.totalorder %s18, 1
      %p147 = scmp.ne.s32.totalorder %s142, %s144
      %p148 = scmp.eq.s32.totalorder %s18, 0
      %p149 = por %p147, %p148
      %p150 = scmp.ne.s32.totalorder %s142, %s144
      %p151 = scmp.eq.s32.totalorder %s23, 1
      %p152 = por %p150, %p151
      %p153 = scmp.ne.s32.totalorder %s144, %s145
      %p154 = scmp.eq.s32.totalorder %s23, 0
      %p155 = por %p153, %p154
      %p156 = scmp.ne.s32.totalorder %s144, %s145
      %p157 = scmp.eq.s32.totalorder %s24, 1
      %p158 = por %p156, %p157
      %p160 = scmp.ne.s32.totalorder %s145, %s159
      %p161 = scmp.eq.s32.totalorder %s24, 0
      %p162 = por %p160, %p161
      %s163 = ssub.s32 %s25, %s37
      %p164 = scmp.eq.s32.totalorder %s163, 0
      %s166 = sadd.s32 %s165, 1
      %s167 = scalar_select %p164, %s165, %s166
      %p170 = pneg %p164
      %p171 = scmp.eq.s32.totalorder %s18, 1
      %p172 = por %p170, %p171
      %p173 = scmp.ne.s32.totalorder %s165, %s168
      %p174 = scmp.eq.s32.totalorder %s18, 0
      %p175 = por %p173, %p174
      %p176 = scmp.ne.s32.totalorder %s165, %s168
      %p177 = scmp.eq.s32.totalorder %s23, 1
      %p178 = por %p176, %p177
      %p179 = scmp.ne.s32.totalorder %s168, %s169
      %p180 = scmp.eq.s32.totalorder %s23, 0
      %p181 = por %p179, %p180
      %p182 = scmp.ne.s32.totalorder %s168, %s169
      %p183 = scmp.eq.s32.totalorder %s24, 1
      %p184 = por %p182, %p183
      %p186 = scmp.ne.s32.totalorder %s169, %s185
      %p187 = scmp.eq.s32.totalorder %s24, 0
      %p188 = por %p186, %p187
      %p189 = scmp.le.s32.totalorder 1, %s18
      %p190 = scmp.lt.s32.totalorder %s18, 3
      %p191 = pnand %p189, %p190
      %p192 = pneg %p191
      // Predicated region
      $region9: #{tpu_custom_call.1} parent=5 // pred_check
        _
      $region10: #{tpu_custom_call.1} parent=5 // pred_check_branch
        %194 = sbr.rel (%p191) target = $region12
      $region11: #{tpu_custom_call.1} parent=5 // pred_region
        %s195 = ssub.s32 %s18, 1
        // Predicated region
        $region13: #{tpu_custom_call.1} parent=11 // pred_check
          %p196 = pneg %p82
        $region14: #{tpu_custom_call.1} parent=11 // pred_check_branch
          %198 = sbr.rel (%p196) target = $region16
        $region15: #{tpu_custom_call.1} parent=11 // pred_region
          %s199 = smul.u32 2, %s28
          %s201 = ssub.s32 2048, 2048
          %202 = vsyncadd [#allocation7], %s201
          %s203 = smul.addr %s199, 64
          %s204 = scalar_lea.hbm %s1, %s203
          %s205 = sshll.u32 [#allocation6], 4
          %s206 = int_to_ptr.vmem [resolvable:$true] %s205
          %211 = dma.hbm_to_vmem [thread:$0]  %s204, 2048, %s206, [#allocation7], 128, 128, 8
        $region16: #{tpu_custom_call.1} parent=11 // pred_fallthru
          _
        // Predicated region
        $region17: #{tpu_custom_call.1} parent=11 // pred_check
          %p212 = pneg %p108
        $region18: #{tpu_custom_call.1} parent=11 // pred_check_branch
          %214 = sbr.rel (%p212) target = $region20
        $region19: #{tpu_custom_call.1} parent=11 // pred_region
          %s215 = smul.u32 2, %s28
          %p216 = scmp.lt.s32.totalorder %s215, 1
          %s217 = scalar_select %p216, %s215, 1
          %s218 = scalar_lea.vmem %s2, %s217
          %s219 = smul.u32 2, %s28
        $region20: #{tpu_custom_call.1} parent=11 // pred_fallthru
          _
        // Predicated region
        $region21: #{tpu_custom_call.1} parent=11 // pred_check
          %p220 = pneg %p134
        $region22: #{tpu_custom_call.1} parent=11 // pred_check_branch
          %222 = sbr.rel (%p220) target = $region24
        $region23: #{tpu_custom_call.1} parent=11 // pred_region
          %s223 = smul.u32 32, %s28
          %s225 = ssub.s32 2048, 2048
          %226 = vsyncadd [#allocation7], %s225
          %s227 = smul.addr %s223, 64
          %s228 = scalar_lea.hbm %s3, %s227
          %s229 = sshll.u32 [#allocation8], 4
          %s230 = int_to_ptr.vmem [resolvable:$true] %s229
          %235 = dma.hbm_to_vmem [thread:$0]  %s228, 2048, %s230, [#allocation7], 64, 64, 4
        $region24: #{tpu_custom_call.1} parent=11 // pred_fallthru
          _
        // Predicated region
        $region25: #{tpu_custom_call.1} parent=11 // pred_check
          %p236 = pneg %p155
        $region26: #{tpu_custom_call.1} parent=11 // pred_check_branch
          %238 = sbr.rel (%p236) target = $region28
        $region27: #{tpu_custom_call.1} parent=11 // pred_region
          _
        $region28: #{tpu_custom_call.1} parent=11 // pred_fallthru
          _
      $region12: #{tpu_custom_call.1} parent=5 // pred_fallthru
        _
      %p239 = scmp.lt.s32.totalorder %s18, 2
      // Predicated region
      $region29: #{tpu_custom_call.1} parent=5 // pred_check
        %p240 = pneg %p239
      $region30: #{tpu_custom_call.1} parent=5 // pred_check_branch
        %242 = sbr.rel (%p240) target = $region32
      $region31: #{tpu_custom_call.1} parent=5 // pred_region
        // Predicated region
        $region33: #{tpu_custom_call.1} parent=31 // pred_check
          %p243 = pneg %p50
        $region34: #{tpu_custom_call.1} parent=31 // pred_check_branch
          %245 = sbr.rel (%p243) target = $region36
        $region35: #{tpu_custom_call.1} parent=31 // pred_region
          %s246 = sand.u32 %s40, 1
          %s247 = scalar_lea.sflag [#allocation4], %s246
          %s248 = sand.u32 %s40, 1
          %s249 = smul.addr %s248, 256
          %s250 = scalar_lea.vmem [#allocation3], %s249
          %s251 = smul.u32 32, %s25
          %s252 = ssub.s32 40, %s251
          %p253 = scmp.lt.s32.totalorder %s252, 32
          %s254 = scalar_select %p253, %s252, 32
          %s255 = smul.u32 128, %s254
          %s257 = ssub.s32 4096, %s255
          %258 = vsyncadd %s247, %s257
          %p259 = scmp.ne.s32.totalorder 0, %s255
          %s260 = smul.addr %s251, 128
          %s261 = scalar_lea.hbm %s0, %s260
          %s262 = smul.u32 8, %s254
          %s263 = sshll.u32 %s250, 4
          %s264 = int_to_ptr.vmem [resolvable:$true] %s263
          %s265 = sshll.u32 %s262, 4
          %269 = dma.hbm_to_vmem [thread:$0]  (%p259), %s261, %s265, %s264, %s247, 128, 128, 8
        $region36: #{tpu_custom_call.1} parent=31 // pred_fallthru
          _
      $region32: #{tpu_custom_call.1} parent=5 // pred_fallthru
        _
      %p270 = scmp.le.s32.totalorder 1, %s18
      %p271 = scmp.lt.s32.totalorder %s18, 3
      %p272 = pnand %p270, %p271
      %p273 = pneg %p272
      // Predicated region
      $region37: #{tpu_custom_call.1} parent=5 // pred_check
        _
      $region38: #{tpu_custom_call.1} parent=5 // pred_check_branch
        %275 = sbr.rel (%p272) target = $region40
      $region39: #{tpu_custom_call.1} parent=5 // pred_region
        %s276 = ssub.s32 %s18, 1
        %s277 = sand.u32 %s43, 1
        %s278 = scalar_lea.sflag [#allocation4], %s277
        %s279 = sand.u32 %s43, 1
        %s280 = smul.addr %s279, 256
        %s281 = scalar_lea.vmem [#allocation3], %s280
        // Predicated region
        $region41: #{tpu_custom_call.1} parent=39 // pred_check
          %p282 = pneg %p56
        $region42: #{tpu_custom_call.1} parent=39 // pred_check_branch
          %284 = sbr.rel (%p282) target = $region44
        $region43: #{tpu_custom_call.1} parent=39 // pred_region
          %285 = dma.done %s278, 4096
        $region44: #{tpu_custom_call.1} parent=39 // pred_fallthru
          _
        // Predicated region
        $region45: #{tpu_custom_call.1} parent=39 // pred_check
          %p286 = pneg %p82
        $region46: #{tpu_custom_call.1} parent=39 // pred_check_branch
          %288 = sbr.rel (%p286) target = $region48
        $region47: #{tpu_custom_call.1} parent=39 // pred_region
          %289 = dma.done [#allocation7], 2048
        $region48: #{tpu_custom_call.1} parent=39 // pred_fallthru
          _
        // Predicated region
        $region49: #{tpu_custom_call.1} parent=39 // pred_check
          %p290 = pneg %p134
        $region50: #{tpu_custom_call.1} parent=39 // pred_check_branch
          %292 = sbr.rel (%p290) target = $region52
        $region51: #{tpu_custom_call.1} parent=39 // pred_region
          %293 = dma.done [#allocation7], 2048
        $region52: #{tpu_custom_call.1} parent=39 // pred_fallthru
          _
        %s294 = sand.u32 %s43, 1
        %s295 = scalar_lea.sflag [#allocation4], %s294
        %s296 = sand.u32 %s43, 1
        %s297 = smul.addr %s296, 256
        %s298 = scalar_lea.vmem [#allocation3], %s297
        %p299 = pneg %p56
        %p300 = pneg %p53
        %p301 = pneg %p82
        %p302 = pneg %p79
        %s303 = smul.u32 2, %s28
        %p304 = scmp.lt.s32.totalorder %s303, 1
        %s305 = scalar_select %p304, %s303, 1
        %s306 = scalar_lea.vmem %s2, %s305
        %p307 = pneg %p108
        %p308 = pneg %p105
        %p309 = pneg %p134
        %p310 = pneg %p131
        %p311 = pneg %p155
        %p312 = pneg %p152
        %p313 = pneg %p181
        %p314 = pneg %p178
        %s315 = sand.u32 %s168, 1
        %s316 = scalar_lea.sflag [#allocation5], %s315
        %s317 = sand.u32 %s168, 1
        %s318 = smul.addr %s317, 256
        %s319 = scalar_lea.vmem [#allocation9], %s318
        %s320 = smul.u32 32, %s27
        %s321 = ssub.s32 40, %s320
        %p322 = scmp.lt.s32.totalorder %s321, 32
        %s323 = scalar_select %p322, %s321, 32
        %s324 = smul.u32 128, %s323
        %s325 = smul.u32 2, %s28
        %s326 = smul.u32 2, %s28
        %p327 = scmp.lt.s32.totalorder %s326, 1
        %s328 = scalar_select %p327, %s326, 1
        %s329 = scalar_lea.vmem %s2, %s328
        %s330 = smul.u32 2, %s28
        %s331 = smul.u32 32, %s28
        %s332 = smul.u32 32, %s27
        %s333 = ssub.s32 40, %s332
        %p334 = scmp.lt.s32.totalorder %s333, 32
        %s335 = scalar_select %p334, %s333, 32
        %s336 = smul.u32 128, %s335
        %p338 = scmp.eq.s32.totalorder %s28, 0
        // Predicated region
        $region53: #{tpu_custom_call.1} parent=39 // pred_check
          %p339 = pneg %p338
        $region54: #{tpu_custom_call.1} parent=39 // pred_check_branch
          %341 = sbr.rel (%p339) target = $region56
        $region55: #{tpu_custom_call.1} parent=39 // pred_region
          %342 = vst [vmem:[#allocation2] sm:$0xff] 0.0
          %343 = vst [vmem:[#allocation2 + $0x8] sm:$0xff] 0.0
          %344 = vst [vmem:[#allocation2 + $0x10] sm:$0xff] 0.0
          %345 = vst [vmem:[#allocation2 + $0x18] sm:$0xff] 0.0
          %346 = vst [vmem:[#allocation2 + $0x20] sm:$0xff] 0.0
          %347 = vst [vmem:[#allocation2 + $0x28] sm:$0xff] 0.0
          %348 = vst [vmem:[#allocation2 + $0x30] sm:$0xff] 0.0
          %349 = vst [vmem:[#allocation2 + $0x38] sm:$0xff] 0.0
          %350 = vst [vmem:[#allocation2 + $0x40] sm:$0xff] 0.0
          %351 = vst [vmem:[#allocation2 + $0x48] sm:$0xff] 0.0
          %352 = vst [vmem:[#allocation2 + $0x50] sm:$0xff] 0.0
          %353 = vst [vmem:[#allocation2 + $0x58] sm:$0xff] 0.0
          %354 = vst [vmem:[#allocation2 + $0x60] sm:$0xff] 0.0
          %355 = vst [vmem:[#allocation2 + $0x68] sm:$0xff] 0.0
          %356 = vst [vmem:[#allocation2 + $0x70] sm:$0xff] 0.0
          %357 = vst [vmem:[#allocation2 + $0x78] sm:$0xff] 0.0
          %358 = vst [vmem:[#allocation2 + $0x80] sm:$0xff] 0.0
          %359 = vst [vmem:[#allocation2 + $0x88] sm:$0xff] 0.0
          %360 = vst [vmem:[#allocation2 + $0x90] sm:$0xff] 0.0
          %361 = vst [vmem:[#allocation2 + $0x98] sm:$0xff] 0.0
          %362 = vst [vmem:[#allocation2 + $0xa0] sm:$0xff] 0.0
          %363 = vst [vmem:[#allocation2 + $0xa8] sm:$0xff] 0.0
          %364 = vst [vmem:[#allocation2 + $0xb0] sm:$0xff] 0.0
          %365 = vst [vmem:[#allocation2 + $0xb8] sm:$0xff] 0.0
          %366 = vst [vmem:[#allocation2 + $0xc0] sm:$0xff] 0.0
          %367 = vst [vmem:[#allocation2 + $0xc8] sm:$0xff] 0.0
          %368 = vst [vmem:[#allocation2 + $0xd0] sm:$0xff] 0.0
          %369 = vst [vmem:[#allocation2 + $0xd8] sm:$0xff] 0.0
          %370 = vst [vmem:[#allocation2 + $0xe0] sm:$0xff] 0.0
          %371 = vst [vmem:[#allocation2 + $0xe8] sm:$0xff] 0.0
          %372 = vst [vmem:[#allocation2 + $0xf0] sm:$0xff] 0.0
          %373 = vst [vmem:[#allocation2 + $0xf8] sm:$0xff] 0.0
        $region56: #{tpu_custom_call.1} parent=39 // pred_fallthru
          _
        %v374 = vld [vmem:[%s281] sm:$0xff]
        %v375 = vld [vmem:[%s281 + $0x8] sm:$0xff]
        %v376 = vld [vmem:[%s281 + $0x10] sm:$0xff]
        %v377 = vld [vmem:[%s281 + $0x18] sm:$0xff]
        %v378 = vld [vmem:[%s281 + $0x20] sm:$0xff]
        %v379 = vld [vmem:[%s281 + $0x28] sm:$0xff]
        %v380 = vld [vmem:[%s281 + $0x30] sm:$0xff]
        %v381 = vld [vmem:[%s281 + $0x38] sm:$0xff]
        %v382 = vld [vmem:[%s281 + $0x40] sm:$0xff]
        %v383 = vld [vmem:[%s281 + $0x48] sm:$0xff]
        %v384 = vld [vmem:[%s281 + $0x50] sm:$0xff]
        %v385 = vld [vmem:[%s281 + $0x58] sm:$0xff]
        %v386 = vld [vmem:[%s281 + $0x60] sm:$0xff]
        %v387 = vld [vmem:[%s281 + $0x68] sm:$0xff]
        %v388 = vld [vmem:[%s281 + $0x70] sm:$0xff]
        %v389 = vld [vmem:[%s281 + $0x78] sm:$0xff]
        %v390 = vld [vmem:[%s281 + $0x80] sm:$0xff]
        %v391 = vld [vmem:[%s281 + $0x88] sm:$0xff]
        %v392 = vld [vmem:[%s281 + $0x90] sm:$0xff]
        %v393 = vld [vmem:[%s281 + $0x98] sm:$0xff]
        %v394 = vld [vmem:[%s281 + $0xa0] sm:$0xff]
        %v395 = vld [vmem:[%s281 + $0xa8] sm:$0xff]
        %v396 = vld [vmem:[%s281 + $0xb0] sm:$0xff]
        %v397 = vld [vmem:[%s281 + $0xb8] sm:$0xff]
        %v398 = vld [vmem:[%s281 + $0xc0] sm:$0xff]
        %v399 = vld [vmem:[%s281 + $0xc8] sm:$0xff]
        %v400 = vld [vmem:[%s281 + $0xd0] sm:$0xff]
        %v401 = vld [vmem:[%s281 + $0xd8] sm:$0xff]
        %v402 = vld [vmem:[%s281 + $0xe0] sm:$0xff]
        %v403 = vld [vmem:[%s281 + $0xe8] sm:$0xff]
        %v404 = vld [vmem:[%s281 + $0xf0] sm:$0xff]
        %v405 = vld [vmem:[%s281 + $0xf8] sm:$0xff]
        %v406 = vpack.c.bf16 %v375, %v374
        %v407 = vpack.c.bf16 %v377, %v376
        %v408 = vpack.c.bf16 %v379, %v378
        %v409 = vpack.c.bf16 %v381, %v380
        %v410 = vpack.c.bf16 %v383, %v382
        %v411 = vpack.c.bf16 %v385, %v384
        %v412 = vpack.c.bf16 %v387, %v386
        %v413 = vpack.c.bf16 %v389, %v388
        %v414 = vpack.c.bf16 %v391, %v390
        %v415 = vpack.c.bf16 %v393, %v392
        %v416 = vpack.c.bf16 %v395, %v394
        %v417 = vpack.c.bf16 %v397, %v396
        %v418 = vpack.c.bf16 %v399, %v398
        %v419 = vpack.c.bf16 %v401, %v400
        %v420 = vpack.c.bf16 %v403, %v402
        %v421 = vpack.c.bf16 %v405, %v404
        %v422 = vld [vmem:[#allocation6] sm:$0xff]
        %v423 = vld [vmem:[#allocation6 + $0x8] sm:$0xff]
        %v424 = vld [vmem:[#allocation6 + $0x10] sm:$0xff]
        %v425 = vld [vmem:[#allocation6 + $0x18] sm:$0xff]
        %v426 = vld [vmem:[#allocation6 + $0x20] sm:$0xff]
        %v427 = vld [vmem:[#allocation6 + $0x28] sm:$0xff]
        %v428 = vld [vmem:[#allocation6 + $0x30] sm:$0xff]
        %v429 = vld [vmem:[#allocation6 + $0x38] sm:$0xff]
        %v430 = vld [vmem:[#allocation6 + $0x40] sm:$0xff]
        %v431 = vld [vmem:[#allocation6 + $0x48] sm:$0xff]
        %v432 = vld [vmem:[#allocation6 + $0x50] sm:$0xff]
        %v433 = vld [vmem:[#allocation6 + $0x58] sm:$0xff]
        %v434 = vld [vmem:[#allocation6 + $0x60] sm:$0xff]
        %v435 = vld [vmem:[#allocation6 + $0x68] sm:$0xff]
        %v436 = vld [vmem:[#allocation6 + $0x70] sm:$0xff]
        %v437 = vld [vmem:[#allocation6 + $0x78] sm:$0xff]
        %v438 = vld [vmem:[%s329] sm:$0x3]
        %v440 = vlaneseq
        %v441 = vshrl.u32 %v440, 7
        %v442 = vsub.s32 0, %v441
        %v443 = vrot.slane %v438, %v442
        %v444 = vlaneseq
        %v445 = vshrl.u32 %v444, 7
        %v446 = vsub.s32 1, %v445
        %v447 = vrot.slane %v438, %v446
        %v466 = vunpack.c.l.b16 %v422
        %v467 = vunpack.c.h.b16 %v422
        %v468 = vunpack.c.l.b16 %v423
        %v469 = vunpack.c.h.b16 %v423
        %v470 = vunpack.c.l.b16 %v424
        %v471 = vunpack.c.h.b16 %v424
        %v472 = vunpack.c.l.b16 %v425
        %v473 = vunpack.c.h.b16 %v425
        %v474 = vunpack.c.l.b16 %v426
        %v475 = vunpack.c.h.b16 %v426
        %v476 = vunpack.c.l.b16 %v427
        %v477 = vunpack.c.h.b16 %v427
        %v478 = vunpack.c.l.b16 %v428
        %v479 = vunpack.c.h.b16 %v428
        %v480 = vunpack.c.l.b16 %v429
        %v481 = vunpack.c.h.b16 %v429
        %v482 = vunpack.c.l.b16 %v430
        %v483 = vunpack.c.h.b16 %v430
        %v484 = vunpack.c.l.b16 %v431
        %v485 = vunpack.c.h.b16 %v431
        %v486 = vunpack.c.l.b16 %v432
        %v487 = vunpack.c.h.b16 %v432
        %v488 = vunpack.c.l.b16 %v433
        %v489 = vunpack.c.h.b16 %v433
        %v490 = vunpack.c.l.b16 %v434
        %v491 = vunpack.c.h.b16 %v434
        %v492 = vunpack.c.l.b16 %v435
        %v493 = vunpack.c.h.b16 %v435
        %v494 = vunpack.c.l.b16 %v436
        %v495 = vunpack.c.h.b16 %v436
        %v496 = vunpack.c.l.b16 %v437
        %v497 = vunpack.c.h.b16 %v437
        %v498 = vpack.c.b16 %v468, %v466
        %v499 = vpack.c.b16 %v469, %v467
        %v500 = vpack.c.b16 %v472, %v470
        %v501 = vpack.c.b16 %v473, %v471
        %v502 = vpack.c.b16 %v476, %v474
        %v503 = vpack.c.b16 %v477, %v475
        %v504 = vpack.c.b16 %v480, %v478
        %v505 = vpack.c.b16 %v481, %v479
        %v506 = vpack.c.b16 %v484, %v482
        %v507 = vpack.c.b16 %v485, %v483
        %v508 = vpack.c.b16 %v488, %v486
        %v509 = vpack.c.b16 %v489, %v487
        %v510 = vpack.c.b16 %v492, %v490
        %v511 = vpack.c.b16 %v493, %v491
        %v512 = vpack.c.b16 %v496, %v494
        %v513 = vpack.c.b16 %v497, %v495
        %530 = vmatprep.subr.bf16.mxu0 %v499
        %531 = vmatpush1.bf16.msra.mxu0 %v498
        %532 = vmatprep.subr.bf16.mxu0 %v501
        %533 = vmatpush1.bf16.msra.mxu0 %v500
        %534 = vmatprep.subr.bf16.mxu0 %v503
        %535 = vmatpush1.bf16.msra.mxu0 %v502
        %536 = vmatprep.subr.bf16.mxu0 %v505
        %537 = vmatpush1.bf16.msra.mxu0 %v504
        %538 = vmatprep.subr.bf16.mxu0 %v507
        %539 = vmatpush1.bf16.msra.mxu0 %v506
        %540 = vmatprep.subr.bf16.mxu0 %v509
        %541 = vmatpush1.bf16.msra.mxu0 %v508
        %542 = vmatprep.subr.bf16.mxu0 %v511
        %543 = vmatpush1.bf16.msra.mxu0 %v510
        %544 = vmatprep.subr.bf16.mxu0 %v513
        %545 = vmatpush1.bf16.msra.mxu0 %v512
        %546 = vmatprep.subr.bf16.mxu0 0
        %547 = vmatpush1.bf16.msra.mxu0 0
        %548 = vmatprep.subr.bf16.mxu0 0
        %549 = vmatpush1.bf16.msra.mxu0 0
        %550 = vmatprep.subr.bf16.mxu0 0
        %551 = vmatpush1.bf16.msra.mxu0 0
        %552 = vmatprep.subr.bf16.mxu0 0
        %553 = vmatpush1.bf16.msra.mxu0 0
        %554 = vmatprep.subr.bf16.mxu0 0
        %555 = vmatpush1.bf16.msra.mxu0 0
        %556 = vmatprep.subr.bf16.mxu0 0
        %557 = vmatpush1.bf16.msra.mxu0 0
        %558 = vmatprep.subr.bf16.mxu0 0
        %559 = vmatpush1.bf16.msra.mxu0 0
        %560 = vmatprep.subr.bf16.mxu0 0
        %561 = vmatpush1.bf16.msra.mxu0 0
        %562 = vmatprep.mubr.bf16.mxu0 0
        %563 = vmatmul.mubr.bf16.gmra.mrb[0].mxu0 %v406
        %v564 = vpop.f32.mrb[0].mxu0
        %v565 = vadd.f32 %v443, %v564
        %v566 = vpop.f32.mrb[0].mxu0
        %v567 = vadd.f32 %v447, %v566
        %v568 = vpop.f32.mrb[0].mxu0
        %v569 = vadd.f32 %v443, %v568
        %v570 = vpop.f32.mrb[0].mxu0
        %v571 = vadd.f32 %v447, %v570
        %572 = vmatprep.mubr.bf16.mxu0 0
        %573 = vmatmul.mubr.bf16.gmra.mrb[0].mxu0 %v407
        %v574 = vpop.f32.mrb[0].mxu0
        %v575 = vadd.f32 %v443, %v574
        %v576 = vpop.f32.mrb[0].mxu0
        %v577 = vadd.f32 %v447, %v576
        %v578 = vpop.f32.mrb[0].mxu0
        %v579 = vadd.f32 %v443, %v578
        %v580 = vpop.f32.mrb[0].mxu0
        %v581 = vadd.f32 %v447, %v580
        %582 = vmatprep.mubr.bf16.mxu0 0
        %583 = vmatmul.mubr.bf16.gmra.mrb[0].mxu0 %v408
        %v584 = vpop.f32.mrb[0].mxu0
        %v585 = vadd.f32 %v443, %v584
        %v586 = vpop.f32.mrb[0].mxu0
        %v587 = vadd.f32 %v447, %v586
        %v588 = vpop.f32.mrb[0].mxu0
        %v589 = vadd.f32 %v443, %v588
        %v590 = vpop.f32.mrb[0].mxu0
        %v591 = vadd.f32 %v447, %v590
        %592 = vmatprep.mubr.bf16.mxu0 0
        %593 = vmatmul.mubr.bf16.gmra.mrb[0].mxu0 %v409
        %v594 = vpop.f32.mrb[0].mxu0
        %v595 = vadd.f32 %v443, %v594
        %v596 = vpop.f32.mrb[0].mxu0
        %v597 = vadd.f32 %v447, %v596
        %v598 = vpop.f32.mrb[0].mxu0
        %v599 = vadd.f32 %v443, %v598
        %v600 = vpop.f32.mrb[0].mxu0
        %v601 = vadd.f32 %v447, %v600
        %602 = vmatprep.mubr.bf16.mxu0 0
        %603 = vmatmul.mubr.bf16.gmra.mrb[0].mxu0 %v410
        %v604 = vpop.f32.mrb[0].mxu0
        %v605 = vadd.f32 %v443, %v604
        %v606 = vpop.f32.mrb[0].mxu0
        %v607 = vadd.f32 %v447, %v606
        %v608 = vpop.f32.mrb[0].mxu0
        %v609 = vadd.f32 %v443, %v608
        %v610 = vpop.f32.mrb[0].mxu0
        %v611 = vadd.f32 %v447, %v610
        %612 = vmatprep.mubr.bf16.mxu0 0
        %613 = vmatmul.mubr.bf16.gmra.mrb[0].mxu0 %v411
        %v614 = vpop.f32.mrb[0].mxu0
        %v615 = vadd.f32 %v443, %v614
        %v616 = vpop.f32.mrb[0].mxu0
        %v617 = vadd.f32 %v447, %v616
        %v618 = vpop.f32.mrb[0].mxu0
        %v619 = vadd.f32 %v443, %v618
        %v620 = vpop.f32.mrb[0].mxu0
        %v621 = vadd.f32 %v447, %v620
        %622 = vmatprep.mubr.bf16.mxu0 0
        %623 = vmatmul.mubr.bf16.gmra.mrb[0].mxu0 %v412
        %v624 = vpop.f32.mrb[0].mxu0
        %v625 = vadd.f32 %v443, %v624
        %v626 = vpop.f32.mrb[0].mxu0
        %v627 = vadd.f32 %v447, %v626
        %v628 = vpop.f32.mrb[0].mxu0
        %v629 = vadd.f32 %v443, %v628
        %v630 = vpop.f32.mrb[0].mxu0
        %v631 = vadd.f32 %v447, %v630
        %632 = vmatprep.mubr.bf16.mxu0 0
        %633 = vmatmul.mubr.bf16.gmra.mrb[0].mxu0 %v413
        %v634 = vpop.f32.mrb[0].mxu0
        %v635 = vadd.f32 %v443, %v634
        %v636 = vpop.f32.mrb[0].mxu0
        %v637 = vadd.f32 %v447, %v636
        %v638 = vpop.f32.mrb[0].mxu0
        %v639 = vadd.f32 %v443, %v638
        %v640 = vpop.f32.mrb[0].mxu0
        %v641 = vadd.f32 %v447, %v640
        %642 = vmatprep.mubr.bf16.mxu0 0
        %643 = vmatmul.mubr.bf16.gmra.mrb[0].mxu0 %v414
        %v644 = vpop.f32.mrb[0].mxu0
        %v645 = vadd.f32 %v443, %v644
        %v646 = vpop.f32.mrb[0].mxu0
        %v647 = vadd.f32 %v447, %v646
        %v648 = vpop.f32.mrb[0].mxu0
        %v649 = vadd.f32 %v443, %v648
        %v650 = vpop.f32.mrb[0].mxu0
        %v651 = vadd.f32 %v447, %v650
        %652 = vmatprep.mubr.bf16.mxu0 0
        %653 = vmatmul.mubr.bf16.gmra.mrb[0].mxu0 %v415
        %v654 = vpop.f32.mrb[0].mxu0
        %v655 = vadd.f32 %v443, %v654
        %v656 = vpop.f32.mrb[0].mxu0
        %v657 = vadd.f32 %v447, %v656
        %v658 = vpop.f32.mrb[0].mxu0
        %v659 = vadd.f32 %v443, %v658
        %v660 = vpop.f32.mrb[0].mxu0
        %v661 = vadd.f32 %v447, %v660
        %662 = vmatprep.mubr.bf16.mxu0 0
        %663 = vmatmul.mubr.bf16.gmra.mrb[0].mxu0 %v416
        %v664 = vpop.f32.mrb[0].mxu0
        %v665 = vadd.f32 %v443, %v664
        %v666 = vpop.f32.mrb[0].mxu0
        %v667 = vadd.f32 %v447, %v666
        %v668 = vpop.f32.mrb[0].mxu0
        %v669 = vadd.f32 %v443, %v668
        %v670 = vpop.f32.mrb[0].mxu0
        %v671 = vadd.f32 %v447, %v670
        %672 = vmatprep.mubr.bf16.mxu0 0
        %673 = vmatmul.mubr.bf16.gmra.mrb[0].mxu0 %v417
        %v674 = vpop.f32.mrb[0].mxu0
        %v675 = vadd.f32 %v443, %v674
        %v676 = vpop.f32.mrb[0].mxu0
        %v677 = vadd.f32 %v447, %v676
        %v678 = vpop.f32.mrb[0].mxu0
        %v679 = vadd.f32 %v443, %v678
        %v680 = vpop.f32.mrb[0].mxu0
        %v681 = vadd.f32 %v447, %v680
        %682 = vmatprep.mubr.bf16.mxu0 0
        %683 = vmatmul.mubr.bf16.gmra.mrb[0].mxu0 %v418
        %v684 = vpop.f32.mrb[0].mxu0
        %v685 = vadd.f32 %v443, %v684
        %v686 = vpop.f32.mrb[0].mxu0
        %v687 = vadd.f32 %v447, %v686
        %v688 = vpop.f32.mrb[0].mxu0
        %v689 = vadd.f32 %v443, %v688
        %v690 = vpop.f32.mrb[0].mxu0
        %v691 = vadd.f32 %v447, %v690
        %692 = vmatprep.mubr.bf16.mxu0 0
        %693 = vmatmul.mubr.bf16.gmra.mrb[0].mxu0 %v419
        %v694 = vpop.f32.mrb[0].mxu0
        %v695 = vadd.f32 %v443, %v694
        %v696 = vpop.f32.mrb[0].mxu0
        %v697 = vadd.f32 %v447, %v696
        %v698 = vpop.f32.mrb[0].mxu0
        %v699 = vadd.f32 %v443, %v698
        %v700 = vpop.f32.mrb[0].mxu0
        %v701 = vadd.f32 %v447, %v700
        %702 = vmatprep.mubr.bf16.mxu0 0
        %703 = vmatmul.mubr.bf16.gmra.mrb[0].mxu0 %v420
        %v704 = vpop.f32.mrb[0].mxu0
        %v705 = vadd.f32 %v443, %v704
        %v706 = vpop.f32.mrb[0].mxu0
        %v707 = vadd.f32 %v447, %v706
        %v708 = vpop.f32.mrb[0].mxu0
        %v709 = vadd.f32 %v443, %v708
        %v710 = vpop.f32.mrb[0].mxu0
        %v711 = vadd.f32 %v447, %v710
        %712 = vmatprep.mubr.bf16.mxu0 0
        %713 = vmatmul.mubr.bf16.gmra.mrb[0].mxu0 %v421
        %v714 = vpop.f32.mrb[0].mxu0
        %v715 = vadd.f32 %v443, %v714
        %v716 = vpop.f32.mrb[0].mxu0
        %v717 = vadd.f32 %v447, %v716
        %v718 = vpop.f32.mrb[0].mxu0
        %v719 = vadd.f32 %v443, %v718
        %v720 = vpop.f32.mrb[0].mxu0
        %v721 = vadd.f32 %v447, %v720
        %722 = vdwg.mxu0
        %v723 = vmax.f32 %v565, 0.0
        %v724 = vmax.f32 %v567, 0.0
        %v725 = vmax.f32 %v569, 0.0
        %v726 = vmax.f32 %v571, 0.0
        %v727 = vmax.f32 %v575, 0.0
        %v728 = vmax.f32 %v577, 0.0
        %v729 = vmax.f32 %v579, 0.0
        %v730 = vmax.f32 %v581, 0.0
        %v731 = vmax.f32 %v585, 0.0
        %v732 = vmax.f32 %v587, 0.0
        %v733 = vmax.f32 %v589, 0.0
        %v734 = vmax.f32 %v591, 0.0
        %v735 = vmax.f32 %v595, 0.0
        %v736 = vmax.f32 %v597, 0.0
        %v737 = vmax.f32 %v599, 0.0
        %v738 = vmax.f32 %v601, 0.0
        %v739 = vmax.f32 %v605, 0.0
        %v740 = vmax.f32 %v607, 0.0
        %v741 = vmax.f32 %v609, 0.0
        %v742 = vmax.f32 %v611, 0.0
        %v743 = vmax.f32 %v615, 0.0
        %v744 = vmax.f32 %v617, 0.0
        %v745 = vmax.f32 %v619, 0.0
        %v746 = vmax.f32 %v621, 0.0
        %v747 = vmax.f32 %v625, 0.0
        %v748 = vmax.f32 %v627, 0.0
        %v749 = vmax.f32 %v629, 0.0
        %v750 = vmax.f32 %v631, 0.0
        %v751 = vmax.f32 %v635, 0.0
        %v752 = vmax.f32 %v637, 0.0
        %v753 = vmax.f32 %v639, 0.0
        %v754 = vmax.f32 %v641, 0.0
        %v755 = vmax.f32 %v645, 0.0
        %v756 = vmax.f32 %v647, 0.0
        %v757 = vmax.f32 %v649, 0.0
        %v758 = vmax.f32 %v651, 0.0
        %v759 = vmax.f32 %v655, 0.0
        %v760 = vmax.f32 %v657, 0.0
        %v761 = vmax.f32 %v659, 0.0
        %v762 = vmax.f32 %v661, 0.0
        %v763 = vmax.f32 %v665, 0.0
        %v764 = vmax.f32 %v667, 0.0
        %v765 = vmax.f32 %v669, 0.0
        %v766 = vmax.f32 %v671, 0.0
        %v767 = vmax.f32 %v675, 0.0
        %v768 = vmax.f32 %v677, 0.0
        %v769 = vmax.f32 %v679, 0.0
        %v770 = vmax.f32 %v681, 0.0
        %v771 = vmax.f32 %v685, 0.0
        %v772 = vmax.f32 %v687, 0.0
        %v773 = vmax.f32 %v689, 0.0
        %v774 = vmax.f32 %v691, 0.0
        %v775 = vmax.f32 %v695, 0.0
        %v776 = vmax.f32 %v697, 0.0
        %v777 = vmax.f32 %v699, 0.0
        %v778 = vmax.f32 %v701, 0.0
        %v779 = vmax.f32 %v705, 0.0
        %v780 = vmax.f32 %v707, 0.0
        %v781 = vmax.f32 %v709, 0.0
        %v782 = vmax.f32 %v711, 0.0
        %v783 = vmax.f32 %v715, 0.0
        %v784 = vmax.f32 %v717, 0.0
        %v785 = vmax.f32 %v719, 0.0
        %v786 = vmax.f32 %v721, 0.0
        %v787 = vld [vmem:[#allocation2] sm:$0xff]
        %v788 = vld [vmem:[#allocation2 + $0x8] sm:$0xff]
        %v789 = vld [vmem:[#allocation2 + $0x10] sm:$0xff]
        %v790 = vld [vmem:[#allocation2 + $0x18] sm:$0xff]
        %v791 = vld [vmem:[#allocation2 + $0x20] sm:$0xff]
        %v792 = vld [vmem:[#allocation2 + $0x28] sm:$0xff]
        %v793 = vld [vmem:[#allocation2 + $0x30] sm:$0xff]
        %v794 = vld [vmem:[#allocation2 + $0x38] sm:$0xff]
        %v795 = vld [vmem:[#allocation2 + $0x40] sm:$0xff]
        %v796 = vld [vmem:[#allocation2 + $0x48] sm:$0xff]
        %v797 = vld [vmem:[#allocation2 + $0x50] sm:$0xff]
        %v798 = vld [vmem:[#allocation2 + $0x58] sm:$0xff]
        %v799 = vld [vmem:[#allocation2 + $0x60] sm:$0xff]
        %v800 = vld [vmem:[#allocation2 + $0x68] sm:$0xff]
        %v801 = vld [vmem:[#allocation2 + $0x70] sm:$0xff]
        %v802 = vld [vmem:[#allocation2 + $0x78] sm:$0xff]
        %v803 = vld [vmem:[#allocation2 + $0x80] sm:$0xff]
        %v804 = vld [vmem:[#allocation2 + $0x88] sm:$0xff]
        %v805 = vld [vmem:[#allocation2 + $0x90] sm:$0xff]
        %v806 = vld [vmem:[#allocation2 + $0x98] sm:$0xff]
        %v807 = vld [vmem:[#allocation2 + $0xa0] sm:$0xff]
        %v808 = vld [vmem:[#allocation2 + $0xa8] sm:$0xff]
        %v809 = vld [vmem:[#allocation2 + $0xb0] sm:$0xff]
        %v810 = vld [vmem:[#allocation2 + $0xb8] sm:$0xff]
        %v811 = vld [vmem:[#allocation2 + $0xc0] sm:$0xff]
        %v812 = vld [vmem:[#allocation2 + $0xc8] sm:$0xff]
        %v813 = vld [vmem:[#allocation2 + $0xd0] sm:$0xff]
        %v814 = vld [vmem:[#allocation2 + $0xd8] sm:$0xff]
        %v815 = vld [vmem:[#allocation2 + $0xe0] sm:$0xff]
        %v816 = vld [vmem:[#allocation2 + $0xe8] sm:$0xff]
        %v817 = vld [vmem:[#allocation2 + $0xf0] sm:$0xff]
        %v818 = vld [vmem:[#allocation2 + $0xf8] sm:$0xff]
        %v819 = vpack.c.bf16 %v725, %v723
        %v820 = vpack.c.bf16 %v726, %v724
        %v821 = vpack.c.bf16 %v729, %v727
        %v822 = vpack.c.bf16 %v730, %v728
        %v823 = vpack.c.bf16 %v733, %v731
        %v824 = vpack.c.bf16 %v734, %v732
        %v825 = vpack.c.bf16 %v737, %v735
        %v826 = vpack.c.bf16 %v738, %v736
        %v827 = vpack.c.bf16 %v741, %v739
        %v828 = vpack.c.bf16 %v742, %v740
        %v829 = vpack.c.bf16 %v745, %v743
        %v830 = vpack.c.bf16 %v746, %v744
        %v831 = vpack.c.bf16 %v749, %v747
        %v832 = vpack.c.bf16 %v750, %v748
        %v833 = vpack.c.bf16 %v753, %v751
        %v834 = vpack.c.bf16 %v754, %v752
        %v835 = vpack.c.bf16 %v757, %v755
        %v836 = vpack.c.bf16 %v758, %v756
        %v837 = vpack.c.bf16 %v761, %v759
        %v838 = vpack.c.bf16 %v762, %v760
        %v839 = vpack.c.bf16 %v765, %v763
        %v840 = vpack.c.bf16 %v766, %v764
        %v841 = vpack.c.bf16 %v769, %v767
        %v842 = vpack.c.bf16 %v770, %v768
        %v843 = vpack.c.bf16 %v773, %v771
        %v844 = vpack.c.bf16 %v774, %v772
        %v845 = vpack.c.bf16 %v777, %v775
        %v846 = vpack.c.bf16 %v778, %v776
        %v847 = vpack.c.bf16 %v781, %v779
        %v848 = vpack.c.bf16 %v782, %v780
        %v849 = vpack.c.bf16 %v785, %v783
        %v850 = vpack.c.bf16 %v786, %v784
        %v851 = vld [vmem:[#allocation8] sm:$0xf]
        %v852 = vld [vmem:[#allocation8 + $0x4] sm:$0xf]
        %v853 = vld [vmem:[#allocation8 + $0x8] sm:$0xf]
        %v854 = vld [vmem:[#allocation8 + $0xc] sm:$0xf]
        %v855 = vld [vmem:[#allocation8 + $0x10] sm:$0xf]
        %v856 = vld [vmem:[#allocation8 + $0x14] sm:$0xf]
        %v857 = vld [vmem:[#allocation8 + $0x18] sm:$0xf]
        %v858 = vld [vmem:[#allocation8 + $0x1c] sm:$0xf]
        %v859 = vld [vmem:[#allocation8 + $0x20] sm:$0xf]
        %v860 = vld [vmem:[#allocation8 + $0x24] sm:$0xf]
        %v861 = vld [vmem:[#allocation8 + $0x28] sm:$0xf]
        %v862 = vld [vmem:[#allocation8 + $0x2c] sm:$0xf]
        %v863 = vld [vmem:[#allocation8 + $0x30] sm:$0xf]
        %v864 = vld [vmem:[#allocation8 + $0x34] sm:$0xf]
        %v865 = vld [vmem:[#allocation8 + $0x38] sm:$0xf]
        %v866 = vld [vmem:[#allocation8 + $0x3c] sm:$0xf]
        %v867 = vld [vmem:[#allocation8 + $0x40] sm:$0xf]
        %v868 = vld [vmem:[#allocation8 + $0x44] sm:$0xf]
        %v869 = vld [vmem:[#allocation8 + $0x48] sm:$0xf]
        %v870 = vld [vmem:[#allocation8 + $0x4c] sm:$0xf]
        %v871 = vld [vmem:[#allocation8 + $0x50] sm:$0xf]
        %v872 = vld [vmem:[#allocation8 + $0x54] sm:$0xf]
        %v873 = vld [vmem:[#allocation8 + $0x58] sm:$0xf]
        %v874 = vld [vmem:[#allocation8 + $0x5c] sm:$0xf]
        %v875 = vld [vmem:[#allocation8 + $0x60] sm:$0xf]
        %v876 = vld [vmem:[#allocation8 + $0x64] sm:$0xf]
        %v877 = vld [vmem:[#allocation8 + $0x68] sm:$0xf]
        %v878 = vld [vmem:[#allocation8 + $0x6c] sm:$0xf]
        %v879 = vld [vmem:[#allocation8 + $0x70] sm:$0xf]
        %v880 = vld [vmem:[#allocation8 + $0x74] sm:$0xf]
        %v881 = vld [vmem:[#allocation8 + $0x78] sm:$0xf]
        %v882 = vld [vmem:[#allocation8 + $0x7c] sm:$0xf]
        %v915 = vunpack.c.l.b16 %v851
        %v916 = vunpack.c.l.b16 %v852
        %v917 = vunpack.c.l.b16 %v853
        %v918 = vunpack.c.l.b16 %v854
        %v919 = vunpack.c.l.b16 %v855
        %v920 = vunpack.c.l.b16 %v856
        %v921 = vunpack.c.l.b16 %v857
        %v922 = vunpack.c.l.b16 %v858
        %v923 = vunpack.c.l.b16 %v859
        %v924 = vunpack.c.l.b16 %v860
        %v925 = vunpack.c.l.b16 %v861
        %v926 = vunpack.c.l.b16 %v862
        %v927 = vunpack.c.l.b16 %v863
        %v928 = vunpack.c.l.b16 %v864
        %v929 = vunpack.c.l.b16 %v865
        %v930 = vunpack.c.l.b16 %v866
        %v931 = vunpack.c.l.b16 %v867
        %v932 = vunpack.c.l.b16 %v868
        %v933 = vunpack.c.l.b16 %v869
        %v934 = vunpack.c.l.b16 %v870
        %v935 = vunpack.c.l.b16 %v871
        %v936 = vunpack.c.l.b16 %v872
        %v937 = vunpack.c.l.b16 %v873
        %v938 = vunpack.c.l.b16 %v874
        %v939 = vunpack.c.l.b16 %v875
        %v940 = vunpack.c.l.b16 %v876
        %v941 = vunpack.c.l.b16 %v877
        %v942 = vunpack.c.l.b16 %v878
        %v943 = vunpack.c.l.b16 %v879
        %v944 = vunpack.c.l.b16 %v880
        %v945 = vunpack.c.l.b16 %v881
        %v946 = vunpack.c.l.b16 %v882
        %v947 = vpack.c.b16 %v916, %v915
        %v948 = vpack.c.b16 %v918, %v917
        %v949 = vpack.c.b16 %v920, %v919
        %v950 = vpack.c.b16 %v922, %v921
        %v951 = vpack.c.b16 %v924, %v923
        %v952 = vpack.c.b16 %v926, %v925
        %v953 = vpack.c.b16 %v928, %v927
        %v954 = vpack.c.b16 %v930, %v929
        %v955 = vpack.c.b16 %v932, %v931
        %v956 = vpack.c.b16 %v934, %v933
        %v957 = vpack.c.b16 %v936, %v935
        %v958 = vpack.c.b16 %v938, %v937
        %v959 = vpack.c.b16 %v940, %v939
        %v960 = vpack.c.b16 %v942, %v941
        %v961 = vpack.c.b16 %v944, %v943
        %v962 = vpack.c.b16 %v946, %v945
        %979 = vmatprep.subr.bf16.mxu0 0
        %980 = vmatpush1.bf16.msra.mxu0 %v947
        %981 = vmatprep.subr.bf16.mxu0 0
        %982 = vmatpush1.bf16.msra.mxu0 %v948
        %983 = vmatprep.subr.bf16.mxu0 0
        %984 = vmatpush1.bf16.msra.mxu0 %v949
        %985 = vmatprep.subr.bf16.mxu0 0
        %986 = vmatpush1.bf16.msra.mxu0 %v950
        %987 = vmatprep.subr.bf16.mxu0 0
        %988 = vmatpush1.bf16.msra.mxu0 %v951
        %989 = vmatprep.subr.bf16.mxu0 0
        %990 = vmatpush1.bf16.msra.mxu0 %v952
        %991 = vmatprep.subr.bf16.mxu0 0
        %992 = vmatpush1.bf16.msra.mxu0 %v953
        %993 = vmatprep.subr.bf16.mxu0 0
        %994 = vmatpush1.bf16.msra.mxu0 %v954
        %995 = vmatprep.subr.bf16.mxu0 0
        %996 = vmatpush1.bf16.msra.mxu0 %v955
        %997 = vmatprep.subr.bf16.mxu0 0
        %998 = vmatpush1.bf16.msra.mxu0 %v956
        %999 = vmatprep.subr.bf16.mxu0 0
        %1000 = vmatpush1.bf16.msra.mxu0 %v957
        %1001 = vmatprep.subr.bf16.mxu0 0
        %1002 = vmatpush1.bf16.msra.mxu0 %v958
        %1003 = vmatprep.subr.bf16.mxu0 0
        %1004 = vmatpush1.bf16.msra.mxu0 %v959
        %1005 = vmatprep.subr.bf16.mxu0 0
        %1006 = vmatpush1.bf16.msra.mxu0 %v960
        %1007 = vmatprep.subr.bf16.mxu0 0
        %1008 = vmatpush1.bf16.msra.mxu0 %v961
        %1009 = vmatprep.subr.bf16.mxu0 0
        %1010 = vmatpush1.bf16.msra.mxu0 %v962
        %1011 = vmatprep.mubr.bf16.mxu0 %v820
        %1012 = vmatmul.mubr.bf16.gmra.mrb[0].mxu0 %v819
        %v1013 = vpop.f32.mrb[0].mxu0
        %v1014 = vadd.f32 0.0, %v1013
        %v1015 = vpop.f32.mrb[0].mxu0
        %v1016 = vpop.f32.mrb[0].mxu0
        %v1017 = vadd.f32 0.0, %v1016
        %v1018 = vpop.f32.mrb[0].mxu0
        %1019 = vmatprep.mubr.bf16.mxu0 %v822
        %1020 = vmatmul.mubr.bf16.gmra.mrb[0].mxu0 %v821
        %v1021 = vpop.f32.mrb[0].mxu0
        %v1022 = vadd.f32 0.0, %v1021
        %v1023 = vpop.f32.mrb[0].mxu0
        %v1024 = vpop.f32.mrb[0].mxu0
        %v1025 = vadd.f32 0.0, %v1024
        %v1026 = vpop.f32.mrb[0].mxu0
        %1027 = vmatprep.mubr.bf16.mxu0 %v824
        %1028 = vmatmul.mubr.bf16.gmra.mrb[0].mxu0 %v823
        %v1029 = vpop.f32.mrb[0].mxu0
        %v1030 = vadd.f32 0.0, %v1029
        %v1031 = vpop.f32.mrb[0].mxu0
        %v1032 = vpop.f32.mrb[0].mxu0
        %v1033 = vadd.f32 0.0, %v1032
        %v1034 = vpop.f32.mrb[0].mxu0
        %1035 = vmatprep.mubr.bf16.mxu0 %v826
        %1036 = vmatmul.mubr.bf16.gmra.mrb[0].mxu0 %v825
        %v1037 = vpop.f32.mrb[0].mxu0
        %v1038 = vadd.f32 0.0, %v1037
        %v1039 = vpop.f32.mrb[0].mxu0
        %v1040 = vpop.f32.mrb[0].mxu0
        %v1041 = vadd.f32 0.0, %v1040
        %v1042 = vpop.f32.mrb[0].mxu0
        %1043 = vmatprep.mubr.bf16.mxu0 %v828
        %1044 = vmatmul.mubr.bf16.gmra.mrb[0].mxu0 %v827
        %v1045 = vpop.f32.mrb[0].mxu0
        %v1046 = vadd.f32 0.0, %v1045
        %v1047 = vpop.f32.mrb[0].mxu0
        %v1048 = vpop.f32.mrb[0].mxu0
        %v1049 = vadd.f32 0.0, %v1048
        %v1050 = vpop.f32.mrb[0].mxu0
        %1051 = vmatprep.mubr.bf16.mxu0 %v830
        %1052 = vmatmul.mubr.bf16.gmra.mrb[0].mxu0 %v829
        %v1053 = vpop.f32.mrb[0].mxu0
        %v1054 = vadd.f32 0.0, %v1053
        %v1055 = vpop.f32.mrb[0].mxu0
        %v1056 = vpop.f32.mrb[0].mxu0
        %v1057 = vadd.f32 0.0, %v1056
        %v1058 = vpop.f32.mrb[0].mxu0
        %1059 = vmatprep.mubr.bf16.mxu0 %v832
        %1060 = vmatmul.mubr.bf16.gmra.mrb[0].mxu0 %v831
        %v1061 = vpop.f32.mrb[0].mxu0
        %v1062 = vadd.f32 0.0, %v1061
        %v1063 = vpop.f32.mrb[0].mxu0
        %v1064 = vpop.f32.mrb[0].mxu0
        %v1065 = vadd.f32 0.0, %v1064
        %v1066 = vpop.f32.mrb[0].mxu0
        %1067 = vmatprep.mubr.bf16.mxu0 %v834
        %1068 = vmatmul.mubr.bf16.gmra.mrb[0].mxu0 %v833
        %v1069 = vpop.f32.mrb[0].mxu0
        %v1070 = vadd.f32 0.0, %v1069
        %v1071 = vpop.f32.mrb[0].mxu0
        %v1072 = vpop.f32.mrb[0].mxu0
        %v1073 = vadd.f32 0.0, %v1072
        %v1074 = vpop.f32.mrb[0].mxu0
        %1075 = vmatprep.mubr.bf16.mxu0 %v836
        %1076 = vmatmul.mubr.bf16.gmra.mrb[0].mxu0 %v835
        %v1077 = vpop.f32.mrb[0].mxu0
        %v1078 = vadd.f32 0.0, %v1077
        %v1079 = vpop.f32.mrb[0].mxu0
        %v1080 = vpop.f32.mrb[0].mxu0
        %v1081 = vadd.f32 0.0, %v1080
        %v1082 = vpop.f32.mrb[0].mxu0
        %1083 = vmatprep.mubr.bf16.mxu0 %v838
        %1084 = vmatmul.mubr.bf16.gmra.mrb[0].mxu0 %v837
        %v1085 = vpop.f32.mrb[0].mxu0
        %v1086 = vadd.f32 0.0, %v1085
        %v1087 = vpop.f32.mrb[0].mxu0
        %v1088 = vpop.f32.mrb[0].mxu0
        %v1089 = vadd.f32 0.0, %v1088
        %v1090 = vpop.f32.mrb[0].mxu0
        %1091 = vmatprep.mubr.bf16.mxu0 %v840
        %1092 = vmatmul.mubr.bf16.gmra.mrb[0].mxu0 %v839
        %v1093 = vpop.f32.mrb[0].mxu0
        %v1094 = vadd.f32 0.0, %v1093
        %v1095 = vpop.f32.mrb[0].mxu0
        %v1096 = vpop.f32.mrb[0].mxu0
        %v1097 = vadd.f32 0.0, %v1096
        %v1098 = vpop.f32.mrb[0].mxu0
        %1099 = vmatprep.mubr.bf16.mxu0 %v842
        %1100 = vmatmul.mubr.bf16.gmra.mrb[0].mxu0 %v841
        %v1101 = vpop.f32.mrb[0].mxu0
        %v1102 = vadd.f32 0.0, %v1101
        %v1103 = vpop.f32.mrb[0].mxu0
        %v1104 = vpop.f32.mrb[0].mxu0
        %v1105 = vadd.f32 0.0, %v1104
        %v1106 = vpop.f32.mrb[0].mxu0
        %1107 = vmatprep.mubr.bf16.mxu0 %v844
        %1108 = vmatmul.mubr.bf16.gmra.mrb[0].mxu0 %v843
        %v1109 = vpop.f32.mrb[0].mxu0
        %v1110 = vadd.f32 0.0, %v1109
        %v1111 = vpop.f32.mrb[0].mxu0
        %v1112 = vpop.f32.mrb[0].mxu0
        %v1113 = vadd.f32 0.0, %v1112
        %v1114 = vpop.f32.mrb[0].mxu0
        %1115 = vmatprep.mubr.bf16.mxu0 %v846
        %1116 = vmatmul.mubr.bf16.gmra.mrb[0].mxu0 %v845
        %v1117 = vpop.f32.mrb[0].mxu0
        %v1118 = vadd.f32 0.0, %v1117
        %v1119 = vpop.f32.mrb[0].mxu0
        %v1120 = vpop.f32.mrb[0].mxu0
        %v1121 = vadd.f32 0.0, %v1120
        %v1122 = vpop.f32.mrb[0].mxu0
        %1123 = vmatprep.mubr.bf16.mxu0 %v848
        %1124 = vmatmul.mubr.bf16.gmra.mrb[0].mxu0 %v847
        %v1125 = vpop.f32.mrb[0].mxu0
        %v1126 = vadd.f32 0.0, %v1125
        %v1127 = vpop.f32.mrb[0].mxu0
        %v1128 = vpop.f32.mrb[0].mxu0
        %v1129 = vadd.f32 0.0, %v1128
        %v1130 = vpop.f32.mrb[0].mxu0
        %1131 = vmatprep.mubr.bf16.mxu0 %v850
        %1132 = vmatmul.mubr.bf16.gmra.mrb[0].mxu0 %v849
        %v1133 = vpop.f32.mrb[0].mxu0
        %v1134 = vadd.f32 0.0, %v1133
        %v1135 = vpop.f32.mrb[0].mxu0
        %v1136 = vpop.f32.mrb[0].mxu0
        %v1137 = vadd.f32 0.0, %v1136
        %v1138 = vpop.f32.mrb[0].mxu0
        %1139 = vdwg.mxu0
        %v1140 = vadd.f32 %v787, %v1014
        %v1141 = vadd.f32 %v788, %v1017
        %v1142 = vadd.f32 %v789, %v1022
        %v1143 = vadd.f32 %v790, %v1025
        %v1144 = vadd.f32 %v791, %v1030
        %v1145 = vadd.f32 %v792, %v1033
        %v1146 = vadd.f32 %v793, %v1038
        %v1147 = vadd.f32 %v794, %v1041
        %v1148 = vadd.f32 %v795, %v1046
        %v1149 = vadd.f32 %v796, %v1049
        %v1150 = vadd.f32 %v797, %v1054
        %v1151 = vadd.f32 %v798, %v1057
        %v1152 = vadd.f32 %v799, %v1062
        %v1153 = vadd.f32 %v800, %v1065
        %v1154 = vadd.f32 %v801, %v1070
        %v1155 = vadd.f32 %v802, %v1073
        %v1156 = vadd.f32 %v803, %v1078
        %v1157 = vadd.f32 %v804, %v1081
        %v1158 = vadd.f32 %v805, %v1086
        %v1159 = vadd.f32 %v806, %v1089
        %v1160 = vadd.f32 %v807, %v1094
        %v1161 = vadd.f32 %v808, %v1097
        %v1162 = vadd.f32 %v809, %v1102
        %v1163 = vadd.f32 %v810, %v1105
        %v1164 = vadd.f32 %v811, %v1110
        %v1165 = vadd.f32 %v812, %v1113
        %v1166 = vadd.f32 %v813, %v1118
        %v1167 = vadd.f32 %v814, %v1121
        %v1168 = vadd.f32 %v815, %v1126
        %v1169 = vadd.f32 %v816, %v1129
        %v1170 = vadd.f32 %v817, %v1134
        %v1171 = vadd.f32 %v818, %v1137
        %1172 = vst [vmem:[#allocation2] sm:$0xff] %v1140
        %1173 = vst [vmem:[#allocation2 + $0x8] sm:$0xff] %v1141
        %1174 = vst [vmem:[#allocation2 + $0x10] sm:$0xff] %v1142
        %1175 = vst [vmem:[#allocation2 + $0x18] sm:$0xff] %v1143
        %1176 = vst [vmem:[#allocation2 + $0x20] sm:$0xff] %v1144
        %1177 = vst [vmem:[#allocation2 + $0x28] sm:$0xff] %v1145
        %1178 = vst [vmem:[#allocation2 + $0x30] sm:$0xff] %v1146
        %1179 = vst [vmem:[#allocation2 + $0x38] sm:$0xff] %v1147
        %1180 = vst [vmem:[#allocation2 + $0x40] sm:$0xff] %v1148
        %1181 = vst [vmem:[#allocation2 + $0x48] sm:$0xff] %v1149
        %1182 = vst [vmem:[#allocation2 + $0x50] sm:$0xff] %v1150
        %1183 = vst [vmem:[#allocation2 + $0x58] sm:$0xff] %v1151
        %1184 = vst [vmem:[#allocation2 + $0x60] sm:$0xff] %v1152
        %1185 = vst [vmem:[#allocation2 + $0x68] sm:$0xff] %v1153
        %1186 = vst [vmem:[#allocation2 + $0x70] sm:$0xff] %v1154
        %1187 = vst [vmem:[#allocation2 + $0x78] sm:$0xff] %v1155
        %1188 = vst [vmem:[#allocation2 + $0x80] sm:$0xff] %v1156
        %1189 = vst [vmem:[#allocation2 + $0x88] sm:$0xff] %v1157
        %1190 = vst [vmem:[#allocation2 + $0x90] sm:$0xff] %v1158
        %1191 = vst [vmem:[#allocation2 + $0x98] sm:$0xff] %v1159
        %1192 = vst [vmem:[#allocation2 + $0xa0] sm:$0xff] %v1160
        %1193 = vst [vmem:[#allocation2 + $0xa8] sm:$0xff] %v1161
        %1194 = vst [vmem:[#allocation2 + $0xb0] sm:$0xff] %v1162
        %1195 = vst [vmem:[#allocation2 + $0xb8] sm:$0xff] %v1163
        %1196 = vst [vmem:[#allocation2 + $0xc0] sm:$0xff] %v1164
        %1197 = vst [vmem:[#allocation2 + $0xc8] sm:$0xff] %v1165
        %1198 = vst [vmem:[#allocation2 + $0xd0] sm:$0xff] %v1166
        %1199 = vst [vmem:[#allocation2 + $0xd8] sm:$0xff] %v1167
        %1200 = vst [vmem:[#allocation2 + $0xe0] sm:$0xff] %v1168
        %1201 = vst [vmem:[#allocation2 + $0xe8] sm:$0xff] %v1169
        %1202 = vst [vmem:[#allocation2 + $0xf0] sm:$0xff] %v1170
        %1203 = vst [vmem:[#allocation2 + $0xf8] sm:$0xff] %v1171
        // Predicated region
        $region57: #{tpu_custom_call.1} parent=39 // pred_check
          %p1204 = pneg %p338
        $region58: #{tpu_custom_call.1} parent=39 // pred_check_branch
          %1206 = sbr.rel (%p1204) target = $region60
        $region59: #{tpu_custom_call.1} parent=39 // pred_region
          %v1207 = vld [vmem:[#allocation2] sm:$0xff]
          %v1208 = vld [vmem:[#allocation2 + $0x8] sm:$0xff]
          %v1209 = vld [vmem:[#allocation2 + $0x10] sm:$0xff]
          %v1210 = vld [vmem:[#allocation2 + $0x18] sm:$0xff]
          %v1211 = vld [vmem:[#allocation2 + $0x20] sm:$0xff]
          %v1212 = vld [vmem:[#allocation2 + $0x28] sm:$0xff]
          %v1213 = vld [vmem:[#allocation2 + $0x30] sm:$0xff]
          %v1214 = vld [vmem:[#allocation2 + $0x38] sm:$0xff]
          %v1215 = vld [vmem:[#allocation2 + $0x40] sm:$0xff]
          %v1216 = vld [vmem:[#allocation2 + $0x48] sm:$0xff]
          %v1217 = vld [vmem:[#allocation2 + $0x50] sm:$0xff]
          %v1218 = vld [vmem:[#allocation2 + $0x58] sm:$0xff]
          %v1219 = vld [vmem:[#allocation2 + $0x60] sm:$0xff]
          %v1220 = vld [vmem:[#allocation2 + $0x68] sm:$0xff]
          %v1221 = vld [vmem:[#allocation2 + $0x70] sm:$0xff]
          %v1222 = vld [vmem:[#allocation2 + $0x78] sm:$0xff]
          %v1223 = vld [vmem:[#allocation2 + $0x80] sm:$0xff]
          %v1224 = vld [vmem:[#allocation2 + $0x88] sm:$0xff]
          %v1225 = vld [vmem:[#allocation2 + $0x90] sm:$0xff]
          %v1226 = vld [vmem:[#allocation2 + $0x98] sm:$0xff]
          %v1227 = vld [vmem:[#allocation2 + $0xa0] sm:$0xff]
          %v1228 = vld [vmem:[#allocation2 + $0xa8] sm:$0xff]
          %v1229 = vld [vmem:[#allocation2 + $0xb0] sm:$0xff]
          %v1230 = vld [vmem:[#allocation2 + $0xb8] sm:$0xff]
          %v1231 = vld [vmem:[#allocation2 + $0xc0] sm:$0xff]
          %v1232 = vld [vmem:[#allocation2 + $0xc8] sm:$0xff]
          %v1233 = vld [vmem:[#allocation2 + $0xd0] sm:$0xff]
          %v1234 = vld [vmem:[#allocation2 + $0xd8] sm:$0xff]
          %v1235 = vld [vmem:[#allocation2 + $0xe0] sm:$0xff]
          %v1236 = vld [vmem:[#allocation2 + $0xe8] sm:$0xff]
          %v1237 = vld [vmem:[#allocation2 + $0xf0] sm:$0xff]
          %v1238 = vld [vmem:[#allocation2 + $0xf8] sm:$0xff]
          %v1239 = vld [vmem:[%s4] sm:$0x1]
          %v1241 = vlaneseq
          %v1242 = vshrl.u32 %v1241, 7
          %v1243 = vsub.s32 0, %v1242
          %v1244 = vrot.slane %v1239, %v1243
          %v1246 = vadd.f32 %v1207, %v1244
          %v1247 = vadd.f32 %v1208, %v1244
          %v1248 = vadd.f32 %v1209, %v1244
          %v1249 = vadd.f32 %v1210, %v1244
          %v1250 = vadd.f32 %v1211, %v1244
          %v1251 = vadd.f32 %v1212, %v1244
          %v1252 = vadd.f32 %v1213, %v1244
          %v1253 = vadd.f32 %v1214, %v1244
          %v1254 = vadd.f32 %v1215, %v1244
          %v1255 = vadd.f32 %v1216, %v1244
          %v1256 = vadd.f32 %v1217, %v1244
          %v1257 = vadd.f32 %v1218, %v1244
          %v1258 = vadd.f32 %v1219, %v1244
          %v1259 = vadd.f32 %v1220, %v1244
          %v1260 = vadd.f32 %v1221, %v1244
          %v1261 = vadd.f32 %v1222, %v1244
          %v1262 = vadd.f32 %v1223, %v1244
          %v1263 = vadd.f32 %v1224, %v1244
          %v1264 = vadd.f32 %v1225, %v1244
          %v1265 = vadd.f32 %v1226, %v1244
          %v1266 = vadd.f32 %v1227, %v1244
          %v1267 = vadd.f32 %v1228, %v1244
          %v1268 = vadd.f32 %v1229, %v1244
          %v1269 = vadd.f32 %v1230, %v1244
          %v1270 = vadd.f32 %v1231, %v1244
          %v1271 = vadd.f32 %v1232, %v1244
          %v1272 = vadd.f32 %v1233, %v1244
          %v1273 = vadd.f32 %v1234, %v1244
          %v1274 = vadd.f32 %v1235, %v1244
          %v1275 = vadd.f32 %v1236, %v1244
          %v1276 = vadd.f32 %v1237, %v1244
          %v1277 = vadd.f32 %v1238, %v1244
          %1278 = vst [vmem:[%s319] sm:$0xff] %v1246
          %1279 = vst [vmem:[%s319 + $0x8] sm:$0xff] %v1247
          %1280 = vst [vmem:[%s319 + $0x10] sm:$0xff] %v1248
          %1281 = vst [vmem:[%s319 + $0x18] sm:$0xff] %v1249
          %1282 = vst [vmem:[%s319 + $0x20] sm:$0xff] %v1250
          %1283 = vst [vmem:[%s319 + $0x28] sm:$0xff] %v1251
          %1284 = vst [vmem:[%s319 + $0x30] sm:$0xff] %v1252
          %1285 = vst [vmem:[%s319 + $0x38] sm:$0xff] %v1253
          %1286 = vst [vmem:[%s319 + $0x40] sm:$0xff] %v1254
          %1287 = vst [vmem:[%s319 + $0x48] sm:$0xff] %v1255
          %1288 = vst [vmem:[%s319 + $0x50] sm:$0xff] %v1256
          %1289 = vst [vmem:[%s319 + $0x58] sm:$0xff] %v1257
          %1290 = vst [vmem:[%s319 + $0x60] sm:$0xff] %v1258
          %1291 = vst [vmem:[%s319 + $0x68] sm:$0xff] %v1259
          %1292 = vst [vmem:[%s319 + $0x70] sm:$0xff] %v1260
          %1293 = vst [vmem:[%s319 + $0x78] sm:$0xff] %v1261
          %1294 = vst [vmem:[%s319 + $0x80] sm:$0xff] %v1262
          %1295 = vst [vmem:[%s319 + $0x88] sm:$0xff] %v1263
          %1296 = vst [vmem:[%s319 + $0x90] sm:$0xff] %v1264
          %1297 = vst [vmem:[%s319 + $0x98] sm:$0xff] %v1265
          %1298 = vst [vmem:[%s319 + $0xa0] sm:$0xff] %v1266
          %1299 = vst [vmem:[%s319 + $0xa8] sm:$0xff] %v1267
          %1300 = vst [vmem:[%s319 + $0xb0] sm:$0xff] %v1268
          %1301 = vst [vmem:[%s319 + $0xb8] sm:$0xff] %v1269
          %1302 = vst [vmem:[%s319 + $0xc0] sm:$0xff] %v1270
          %1303 = vst [vmem:[%s319 + $0xc8] sm:$0xff] %v1271
          %1304 = vst [vmem:[%s319 + $0xd0] sm:$0xff] %v1272
          %1305 = vst [vmem:[%s319 + $0xd8] sm:$0xff] %v1273
          %1306 = vst [vmem:[%s319 + $0xe0] sm:$0xff] %v1274
          %1307 = vst [vmem:[%s319 + $0xe8] sm:$0xff] %v1275
          %1308 = vst [vmem:[%s319 + $0xf0] sm:$0xff] %v1276
          %1309 = vst [vmem:[%s319 + $0xf8] sm:$0xff] %v1277
        $region60: #{tpu_custom_call.1} parent=39 // pred_fallthru
          _
        %s1310 = sand.u32 %s168, 1
        %s1311 = scalar_lea.sflag [#allocation5], %s1310
        %s1312 = sand.u32 %s168, 1
        %s1313 = smul.addr %s1312, 256
        %s1314 = scalar_lea.vmem [#allocation9], %s1313
        // Predicated region
        $region61: #{tpu_custom_call.1} parent=39 // pred_check
          %p1315 = pneg %p178
        $region62: #{tpu_custom_call.1} parent=39 // pred_check_branch
          %1317 = sbr.rel (%p1315) target = $region64
        $region63: #{tpu_custom_call.1} parent=39 // pred_region
          %s1318 = smul.u32 32, %s27
          %s1319 = ssub.s32 40, %s1318
          %p1320 = scmp.lt.s32.totalorder %s1319, 32
          %s1321 = scalar_select %p1320, %s1319, 32
          %s1322 = smul.u32 128, %s1321
          %s1324 = ssub.s32 4096, %s1322
          %1325 = vsyncadd %s1311, %s1324
          %p1326 = scmp.ne.s32.totalorder 0, %s1322
          %s1327 = smul.addr %s1318, 128
          %s1328 = scalar_lea.hbm %s5, %s1327
          %s1329 = smul.u32 8, %s1321
          %s1330 = sshll.u32 %s1314, 4
          %s1331 = int_to_ptr.vmem [resolvable:$true] %s1330
          %s1332 = sshll.u32 %s1329, 4
          %1336 = dma.vmem_to_hbm [thread:$0]  (%p1326), %s1331, %s1332, %s1328, %s1311, 128, 128, 8
        $region64: #{tpu_custom_call.1} parent=39 // pred_fallthru
          _
      $region40: #{tpu_custom_call.1} parent=5 // pred_fallthru
        _
      %p1337 = scmp.le.s32.totalorder 2, %s18
      // Predicated region
      $region65: #{tpu_custom_call.1} parent=5 // pred_check
        %p1338 = pneg %p1337
      $region66: #{tpu_custom_call.1} parent=5 // pred_check_branch
        %1340 = sbr.rel (%p1338) target = $region68
      $region67: #{tpu_custom_call.1} parent=5 // pred_region
        %s1341 = ssub.s32 %s18, 2
        // Predicated region
        $region69: #{tpu_custom_call.1} parent=67 // pred_check
          %p1342 = pneg %p184
        $region70: #{tpu_custom_call.1} parent=67 // pred_check_branch
          %1344 = sbr.rel (%p1342) target = $region72
        $region71: #{tpu_custom_call.1} parent=67 // pred_region
          %s1345 = sand.u32 %s169, 1
          %s1346 = scalar_lea.sflag [#allocation5], %s1345
          %s1347 = sand.u32 %s169, 1
          %s1348 = smul.addr %s1347, 256
          %s1349 = scalar_lea.vmem [#allocation9], %s1348
          %1350 = dma.done %s1346, 4096
        $region72: #{tpu_custom_call.1} parent=67 // pred_fallthru
          _
      $region68: #{tpu_custom_call.1} parent=5 // pred_fallthru
        _
    $region6: #{tpu_custom_call.1} parent=1 // loop_footer
      %s22 = sadd.s32 1, %s18
    $region7: #{tpu_custom_call.1} parent=1 // loop_footer_branch
      %17 = sbr.rel target = $region3
    $region8: #{tpu_custom_call.1} parent=1 // loop_exit
      _
    %1351 = vsyncpa [#allocation4], 1
    %s1352 = scalar_lea.sflag [#allocation4], 1
    %1353 = vsyncpa %s1352, 1
    %1354 = vsyncpa [#allocation7], 1
    %1355 = vsyncpa [#allocation5], 1
    %s1356 = scalar_lea.sflag [#allocation5], 1
    %1357 = vsyncpa %s1356, 1

</llo_original>
